<compile_context>
chip_gen: v5e
topology: v5e:2x2
jax: 0.10.0
libtpu: 0.0.40
codegen_flags: <defaults>
</compile_context>

<pallas_src>
import functools

import jax
import jax.numpy as jnp
from jax.experimental import pallas as pl
from jax.experimental.pallas import tpu as pltpu


LANE = 128
SUBLANE = 8


def _round_up(x, m):
    return ((x + m - 1) // m) * m


def _pad2d(w, rows, cols):
    return jnp.pad(w, ((0, rows - w.shape[0]), (0, cols - w.shape[1])))


# ----------------------------------------------------------------------------
# Wrapper: fold attention into decoder1, pack operands into two slabs, one pallas_call
# ----------------------------------------------------------------------------
def forward(params, a_hat, x):
    n, f = x.shape
    hidden = params["e1"][0].shape[1]
    latent = params["e4"][0].shape[1]
    assert max(f, hidden, latent) <= LANE
    n_pad = _round_up(n, SUBLANE)

    # --- fold degenerate (seq_len == 1) multi-head attention, then fold it into decoder1.
    # Exact in eval mode: softmax over a single key == 1, so attended == V and the block is
    # out_proj(in_proj_v(z)) = z@(Wv@Wo) + (bv@Wo + bo).
    attn = params["attn"]
    w_att = attn["wv"] @ attn["wo"]                       # (latent, latent)
    b_att = attn["bv"] @ attn["wo"] + attn["bo"]          # (1, latent)
    wd1, bd1 = params["d1"]
    w_d1f = w_att @ wd1                                    # (latent, hidden)
    b_d1f = b_att @ wd1                                    # (1, hidden)  -- pre-aggregation bias

    # --- one lane-dense bf16 slab: A_hat, X and the 8 weight matrices, all padded to 128 lanes.
    mats = [
        _pad2d(a_hat, n_pad, LANE),          # rows [0, n_pad)
        _pad2d(x, n_pad, LANE),              # rows [n_pad, 2*n_pad)
        _pad2d(params["e1"][0], LANE, LANE),
        _pad2d(params["e2"][0], LANE, LANE),
        _pad2d(params["e3"][0], LANE, LANE),
        _pad2d(params["e4"][0], LANE, LANE),
        _pad2d(w_d1f, LANE, LANE),
        _pad2d(params["d2"][0], LANE, LANE),
        _pad2d(params["d3"][0], LANE, LANE),
        _pad2d(params["d4"][0], LANE, LANE),
    ]
    w_slab = jnp.concatenate(mats, axis=0).astype(jnp.bfloat16)

    a_off = 0
    x_off = n_pad
    w_offs = [2 * n_pad + i * LANE for i in range(8)]      # we1..we4, w_d1f, wd2..wd4

    # --- one small f32 bias slab (epilogue stays f32).
    biases = [
        params["e1"][1], params["e2"][1], params["e3"][1], params["e4"][1],
        b_d1f, bd1, params["d2"][1], params["d3"][1], params["d4"][1],
    ]
    b_slab = jnp.concatenate([_pad2d(b, 1, LANE) for b in biases], axis=0).astype(jnp.float32)
    BE1, BE2, BE3, BE4, BD1F, BD1, BD2, BD3, BD4 = range(9)

    # ------------------------------------------------------------------------
    # Fused kernel: whole forward pass in one launch.
    # ------------------------------------------------------------------------
    def kernel(w_ref, b_ref, xr_ref, z_ref):
        a = w_ref[a_off:a_off + n_pad, 0:n_pad]            # (n_pad, n_pad) bf16

        def bias(i):
            return b_ref[i:i + 1, :]                       # (1, LANE) f32

        def gcn(h, w_off, b_idx, relu=True, residual=None, inner_b_idx=None):
            # GCNConv: A_hat @ (H @ W) + b ; bf16 MXU operands, f32 accumulate + f32 epilogue.
            xw = jnp.dot(h.astype(jnp.bfloat16),
                         w_ref[w_off:w_off + LANE, :],
                         preferred_element_type=jnp.float32)
            if inner_b_idx is not None:                    # folded attention bias (pre-aggregation)
                xw = xw + bias(inner_b_idx)
            out = jnp.dot(a, xw.astype(jnp.bfloat16),
                          preferred_element_type=jnp.float32) + bias(b_idx)
            if relu:
                out = jnp.maximum(out, 0.0)
            if residual is not None:                       # residual added AFTER ReLU (matches ref)
                out = out + residual
            return out

        # ---- encode ----
        x_in = w_ref[x_off:x_off + n_pad, :]               # (n_pad, LANE) bf16, extra cols are 0
        h1 = gcn(x_in, w_offs[0], BE1)
        h2 = gcn(h1, w_offs[1], BE2, residual=h1)
        h3 = gcn(h2, w_offs[2], BE3, residual=h2)
        z = gcn(h3, w_offs[3], BE4, relu=False)            # (n_pad, LANE), cols >= latent are 0
        z_ref[...] = z                                     # store early: frees vregs, overlaps decode

        # ---- decode (attention folded into decoder1) ----
        g1 = gcn(z, w_offs[4], BD1, inner_b_idx=BD1F)
        g2 = gcn(g1, w_offs[5], BD2, residual=g1)
        g3 = gcn(g2, w_offs[6], BD3, residual=g2)
        xr_ref[...] = gcn(g3, w_offs[7], BD4, relu=False)  # lane-dense unmasked store

    vmem = functools.partial(pl.BlockSpec, memory_space=pltpu.MemorySpace.VMEM)
    xr_pad, z_pad = pl.pallas_call(
        kernel,
        out_shape=(jax.ShapeDtypeStruct((n_pad, LANE), jnp.float32),
                   jax.ShapeDtypeStruct((n_pad, LANE), jnp.float32)),
        in_specs=[vmem(), vmem()],
        out_specs=(vmem(), vmem()),
    )(w_slab, b_slab)

    return xr_pad[:n, :f], z_pad[:n, :latent]


# ----------------------------------------------------------------------------
# Parameter construction (deterministic, glorot-ish scaling)
# ----------------------------------------------------------------------------
def _dense(key, f_in, f_out):
    scale = 1.0 / jnp.sqrt(jnp.float32(f_in))
    w = jax.random.normal(key, (f_in, f_out), jnp.float32) * scale
    b = jnp.zeros((1, f_out), jnp.float32)
    return w, b


def init_params(key, num_features, hidden_dim, latent_dim):
    keys = jax.random.split(key, 16)
    p = {}
    dims = [
        ("e1", num_features, hidden_dim), ("e2", hidden_dim, hidden_dim),
        ("e3", hidden_dim, hidden_dim), ("e4", hidden_dim, latent_dim),
        ("d1", latent_dim, hidden_dim), ("d2", hidden_dim, hidden_dim),
        ("d3", hidden_dim, hidden_dim), ("d4", hidden_dim, num_features),
    ]
    for i, (name, fi, fo) in enumerate(dims):
        p[name] = _dense(keys[i], fi, fo)
    # MultiheadAttention(latent_dim, num_heads=4); weights stored transposed to [in, out].
    # wq/wk/bq/bk exist as parameters but never affect the seq_len == 1 forward pass.
    attn = {}
    attn["wq"], attn["bq"] = _dense(keys[8], latent_dim, latent_dim)
    attn["wk"], attn["bk"] = _dense(keys[9], latent_dim, latent_dim)
    attn["wv"], attn["bv"] = _dense(keys[10], latent_dim, latent_dim)
    attn["wo"], attn["bo"] = _dense(keys[11], latent_dim, latent_dim)
    p["attn"] = attn
    # TODO(synk): node_decoder / global_pool heads exist in __init__ but are unused in forward().
    return p


def build_norm_adj(edge_index, num_nodes):
    """Dense symmetric GCN normalization: D^-1/2 (A + I_missing) D^-1/2.

    Duplicate edges are summed (matches PyG scatter-add) and self-loops are only added
    to nodes that do not already have one (matches add_remaining_self_loops).
    """
    src, dst = edge_index
    a = jnp.zeros((num_nodes, num_nodes), jnp.float32)
    a = a.at[dst, src].add(1.0)             # messages flow src -> dst (rows aggregate)
    diag = jnp.diagonal(a)
    a = a + jnp.diag(jnp.where(diag == 0.0, 1.0, 0.0))
    deg = jnp.sum(a, axis=1)
    dinv = jnp.where(deg > 0.0, 1.0 / jnp.sqrt(deg), 0.0)
    return a * dinv[:, None] * dinv[None, :]


if __name__ == "__main__":
    num_nodes = 32
    num_features = 16
    hidden_dim = 32
    latent_dim = 16   # divisible by num_heads = 4

    key = jax.random.PRNGKey(0)
    k_x, k_p = jax.random.split(key)

    # node features
    x = jax.random.normal(k_x, (num_nodes, num_features), jnp.float32)

    # deterministic undirected ring graph (both directions listed)
    src = jnp.arange(num_nodes, dtype=jnp.int32)
    dst = (src + 1) % num_nodes
    edge_index = jnp.stack([jnp.concatenate([src, dst]),
                            jnp.concatenate([dst, src])], axis=0)

    a_hat = build_norm_adj(edge_index, num_nodes)
    params = init_params(k_p, num_features, hidden_dim, latent_dim)

    x_recon, z = jax.jit(forward)(params, a_hat, x)
    jax.block_until_ready((x_recon, z))

    assert x_recon.shape == (num_nodes, num_features)
    assert z.shape == (num_nodes, latent_dim)
    assert bool(jnp.all(jnp.isfinite(x_recon))) and bool(jnp.all(jnp.isfinite(z)))
    print("KERNEL_OK")
</pallas_src>

<mosaic_0001>
module attributes {stable_mosaic.version = 11 : i64} {
  func.func @kernel(%arg0: memref<1088x128xbf16, #tpu.memory_space<vmem>>, %arg1: memref<9x128xf32, #tpu.memory_space<vmem>>, %arg2: memref<32x128xf32, #tpu.memory_space<vmem>>, %arg3: memref<32x128xf32, #tpu.memory_space<vmem>>) attributes {dimension_semantics = [], scalar_prefetch = 0 : i64, scratch_operands = 0 : i64, tpu.core_type = #tpu.core_type<tc>} {
    %c0 = arith.constant 0 : index
    %c0_0 = arith.constant 0 : index
    %0 = vector.load %arg0[%c0, %c0_0] : memref<1088x128xbf16, #tpu.memory_space<vmem>>, vector<32x32xbf16>
    %c32 = arith.constant 32 : index
    %c0_1 = arith.constant 0 : index
    %1 = vector.load %arg0[%c32, %c0_1] : memref<1088x128xbf16, #tpu.memory_space<vmem>>, vector<32x128xbf16>
    %c64 = arith.constant 64 : index
    %c0_2 = arith.constant 0 : index
    %2 = vector.load %arg0[%c64, %c0_2] : memref<1088x128xbf16, #tpu.memory_space<vmem>>, vector<128x128xbf16>
    %cst = arith.constant dense<0.000000e+00> : vector<32x128xf32>
    %3 = tpu.matmul %1, %2, %cst {dimension_numbers = #tpu.dot_dimension_numbers<[1], [0], [0], [1], [0, 0, 1, 1], [], []>} : vector<32x128xbf16>, vector<128x128xbf16>, vector<32x128xf32> -> vector<32x128xf32>
    %4 = arith.truncf %3 : vector<32x128xf32> to vector<32x128xbf16>
    %cst_3 = arith.constant dense<0.000000e+00> : vector<32x128xf32>
    %5 = tpu.matmul %0, %4, %cst_3 {dimension_numbers = #tpu.dot_dimension_numbers<[1], [0], [0], [1], [0, 0, 1, 1], [], []>} : vector<32x32xbf16>, vector<32x128xbf16>, vector<32x128xf32> -> vector<32x128xf32>
    %c0_4 = arith.constant 0 : index
    %c0_5 = arith.constant 0 : index
    %6 = vector.load %arg1[%c0_4, %c0_5] : memref<9x128xf32, #tpu.memory_space<vmem>>, vector<1x128xf32>
    %7 = vector.broadcast %6 : vector<1x128xf32> to vector<32x128xf32>
    %8 = arith.addf %5, %7 : vector<32x128xf32>
    %cst_6 = arith.constant 0.000000e+00 : f32
    %9 = vector.broadcast %cst_6 : f32 to vector<32x128xf32>
    %10 = arith.maximumf %8, %9 : vector<32x128xf32>
    %11 = arith.truncf %10 : vector<32x128xf32> to vector<32x128xbf16>
    %c192 = arith.constant 192 : index
    %c0_7 = arith.constant 0 : index
    %12 = vector.load %arg0[%c192, %c0_7] : memref<1088x128xbf16, #tpu.memory_space<vmem>>, vector<128x128xbf16>
    %cst_8 = arith.constant dense<0.000000e+00> : vector<32x128xf32>
    %13 = tpu.matmul %11, %12, %cst_8 {dimension_numbers = #tpu.dot_dimension_numbers<[1], [0], [0], [1], [0, 0, 1, 1], [], []>} : vector<32x128xbf16>, vector<128x128xbf16>, vector<32x128xf32> -> vector<32x128xf32>
    %14 = arith.truncf %13 : vector<32x128xf32> to vector<32x128xbf16>
    %cst_9 = arith.constant dense<0.000000e+00> : vector<32x128xf32>
    %15 = tpu.matmul %0, %14, %cst_9 {dimension_numbers = #tpu.dot_dimension_numbers<[1], [0], [0], [1], [0, 0, 1, 1], [], []>} : vector<32x32xbf16>, vector<32x128xbf16>, vector<32x128xf32> -> vector<32x128xf32>
    %c1 = arith.constant 1 : index
    %c0_10 = arith.constant 0 : index
    %16 = vector.load %arg1[%c1, %c0_10] : memref<9x128xf32, #tpu.memory_space<vmem>>, vector<1x128xf32>
    %17 = vector.broadcast %16 : vector<1x128xf32> to vector<32x128xf32>
    %18 = arith.addf %15, %17 : vector<32x128xf32>
    %cst_11 = arith.constant 0.000000e+00 : f32
    %19 = vector.broadcast %cst_11 : f32 to vector<32x128xf32>
    %20 = arith.maximumf %18, %19 : vector<32x128xf32>
    %21 = arith.addf %20, %10 : vector<32x128xf32>
    %22 = arith.truncf %21 : vector<32x128xf32> to vector<32x128xbf16>
    %c320 = arith.constant 320 : index
    %c0_12 = arith.constant 0 : index
    %23 = vector.load %arg0[%c320, %c0_12] : memref<1088x128xbf16, #tpu.memory_space<vmem>>, vector<128x128xbf16>
    %cst_13 = arith.constant dense<0.000000e+00> : vector<32x128xf32>
    %24 = tpu.matmul %22, %23, %cst_13 {dimension_numbers = #tpu.dot_dimension_numbers<[1], [0], [0], [1], [0, 0, 1, 1], [], []>} : vector<32x128xbf16>, vector<128x128xbf16>, vector<32x128xf32> -> vector<32x128xf32>
    %25 = arith.truncf %24 : vector<32x128xf32> to vector<32x128xbf16>
    %cst_14 = arith.constant dense<0.000000e+00> : vector<32x128xf32>
    %26 = tpu.matmul %0, %25, %cst_14 {dimension_numbers = #tpu.dot_dimension_numbers<[1], [0], [0], [1], [0, 0, 1, 1], [], []>} : vector<32x32xbf16>, vector<32x128xbf16>, vector<32x128xf32> -> vector<32x128xf32>
    %c2 = arith.constant 2 : index
    %c0_15 = arith.constant 0 : index
    %27 = vector.load %arg1[%c2, %c0_15] : memref<9x128xf32, #tpu.memory_space<vmem>>, vector<1x128xf32>
    %28 = vector.broadcast %27 : vector<1x128xf32> to vector<32x128xf32>
    %29 = arith.addf %26, %28 : vector<32x128xf32>
    %cst_16 = arith.constant 0.000000e+00 : f32
    %30 = vector.broadcast %cst_16 : f32 to vector<32x128xf32>
    %31 = arith.maximumf %29, %30 : vector<32x128xf32>
    %32 = arith.addf %31, %21 : vector<32x128xf32>
    %33 = arith.truncf %32 : vector<32x128xf32> to vector<32x128xbf16>
    %c448 = arith.constant 448 : index
    %c0_17 = arith.constant 0 : index
    %34 = vector.load %arg0[%c448, %c0_17] : memref<1088x128xbf16, #tpu.memory_space<vmem>>, vector<128x128xbf16>
    %cst_18 = arith.constant dense<0.000000e+00> : vector<32x128xf32>
    %35 = tpu.matmul %33, %34, %cst_18 {dimension_numbers = #tpu.dot_dimension_numbers<[1], [0], [0], [1], [0, 0, 1, 1], [], []>} : vector<32x128xbf16>, vector<128x128xbf16>, vector<32x128xf32> -> vector<32x128xf32>
    %36 = arith.truncf %35 : vector<32x128xf32> to vector<32x128xbf16>
    %cst_19 = arith.constant dense<0.000000e+00> : vector<32x128xf32>
    %37 = tpu.matmul %0, %36, %cst_19 {dimension_numbers = #tpu.dot_dimension_numbers<[1], [0], [0], [1], [0, 0, 1, 1], [], []>} : vector<32x32xbf16>, vector<32x128xbf16>, vector<32x128xf32> -> vector<32x128xf32>
    %c3 = arith.constant 3 : index
    %c0_20 = arith.constant 0 : index
    %38 = vector.load %arg1[%c3, %c0_20] : memref<9x128xf32, #tpu.memory_space<vmem>>, vector<1x128xf32>
    %39 = vector.broadcast %38 : vector<1x128xf32> to vector<32x128xf32>
    %40 = arith.addf %37, %39 : vector<32x128xf32>
    %c0_21 = arith.constant 0 : index
    %c0_22 = arith.constant 0 : index
    %41 = vector.load %arg3[%c0_21, %c0_22] : memref<32x128xf32, #tpu.memory_space<vmem>>, vector<32x128xf32>
    tpu.vector_store %arg3[%c0_21, %c0_22], %40 {strides = array<i32>} : memref<32x128xf32, #tpu.memory_space<vmem>>, vector<32x128xf32>,
    %42 = arith.truncf %40 : vector<32x128xf32> to vector<32x128xbf16>
    %c576 = arith.constant 576 : index
    %c0_23 = arith.constant 0 : index
    %43 = vector.load %arg0[%c576, %c0_23] : memref<1088x128xbf16, #tpu.memory_space<vmem>>, vector<128x128xbf16>
    %cst_24 = arith.constant dense<0.000000e+00> : vector<32x128xf32>
    %44 = tpu.matmul %42, %43, %cst_24 {dimension_numbers = #tpu.dot_dimension_numbers<[1], [0], [0], [1], [0, 0, 1, 1], [], []>} : vector<32x128xbf16>, vector<128x128xbf16>, vector<32x128xf32> -> vector<32x128xf32>
    %c4 = arith.constant 4 : index
    %c0_25 = arith.constant 0 : index
    %45 = vector.load %arg1[%c4, %c0_25] : memref<9x128xf32, #tpu.memory_space<vmem>>, vector<1x128xf32>
    %46 = vector.broadcast %45 : vector<1x128xf32> to vector<32x128xf32>
    %47 = arith.addf %44, %46 : vector<32x128xf32>
    %48 = arith.truncf %47 : vector<32x128xf32> to vector<32x128xbf16>
    %cst_26 = arith.constant dense<0.000000e+00> : vector<32x128xf32>
    %49 = tpu.matmul %0, %48, %cst_26 {dimension_numbers = #tpu.dot_dimension_numbers<[1], [0], [0], [1], [0, 0, 1, 1], [], []>} : vector<32x32xbf16>, vector<32x128xbf16>, vector<32x128xf32> -> vector<32x128xf32>
    %c5 = arith.constant 5 : index
    %c0_27 = arith.constant 0 : index
    %50 = vector.load %arg1[%c5, %c0_27] : memref<9x128xf32, #tpu.memory_space<vmem>>, vector<1x128xf32>
    %51 = vector.broadcast %50 : vector<1x128xf32> to vector<32x128xf32>
    %52 = arith.addf %49, %51 : vector<32x128xf32>
    %cst_28 = arith.constant 0.000000e+00 : f32
    %53 = vector.broadcast %cst_28 : f32 to vector<32x128xf32>
    %54 = arith.maximumf %52, %53 : vector<32x128xf32>
    %55 = arith.truncf %54 : vector<32x128xf32> to vector<32x128xbf16>
    %c704 = arith.constant 704 : index
    %c0_29 = arith.constant 0 : index
    %56 = vector.load %arg0[%c704, %c0_29] : memref<1088x128xbf16, #tpu.memory_space<vmem>>, vector<128x128xbf16>
    %cst_30 = arith.constant dense<0.000000e+00> : vector<32x128xf32>
    %57 = tpu.matmul %55, %56, %cst_30 {dimension_numbers = #tpu.dot_dimension_numbers<[1], [0], [0], [1], [0, 0, 1, 1], [], []>} : vector<32x128xbf16>, vector<128x128xbf16>, vector<32x128xf32> -> vector<32x128xf32>
    %58 = arith.truncf %57 : vector<32x128xf32> to vector<32x128xbf16>
    %cst_31 = arith.constant dense<0.000000e+00> : vector<32x128xf32>
    %59 = tpu.matmul %0, %58, %cst_31 {dimension_numbers = #tpu.dot_dimension_numbers<[1], [0], [0], [1], [0, 0, 1, 1], [], []>} : vector<32x32xbf16>, vector<32x128xbf16>, vector<32x128xf32> -> vector<32x128xf32>
    %c6 = arith.constant 6 : index
    %c0_32 = arith.constant 0 : index
    %60 = vector.load %arg1[%c6, %c0_32] : memref<9x128xf32, #tpu.memory_space<vmem>>, vector<1x128xf32>
    %61 = vector.broadcast %60 : vector<1x128xf32> to vector<32x128xf32>
    %62 = arith.addf %59, %61 : vector<32x128xf32>
    %cst_33 = arith.constant 0.000000e+00 : f32
    %63 = vector.broadcast %cst_33 : f32 to vector<32x128xf32>
    %64 = arith.maximumf %62, %63 : vector<32x128xf32>
    %65 = arith.addf %64, %54 : vector<32x128xf32>
    %66 = arith.truncf %65 : vector<32x128xf32> to vector<32x128xbf16>
    %c832 = arith.constant 832 : index
    %c0_34 = arith.constant 0 : index
    %67 = vector.load %arg0[%c832, %c0_34] : memref<1088x128xbf16, #tpu.memory_space<vmem>>, vector<128x128xbf16>
    %cst_35 = arith.constant dense<0.000000e+00> : vector<32x128xf32>
    %68 = tpu.matmul %66, %67, %cst_35 {dimension_numbers = #tpu.dot_dimension_numbers<[1], [0], [0], [1], [0, 0, 1, 1], [], []>} : vector<32x128xbf16>, vector<128x128xbf16>, vector<32x128xf32> -> vector<32x128xf32>
    %69 = arith.truncf %68 : vector<32x128xf32> to vector<32x128xbf16>
    %cst_36 = arith.constant dense<0.000000e+00> : vector<32x128xf32>
    %70 = tpu.matmul %0, %69, %cst_36 {dimension_numbers = #tpu.dot_dimension_numbers<[1], [0], [0], [1], [0, 0, 1, 1], [], []>} : vector<32x32xbf16>, vector<32x128xbf16>, vector<32x128xf32> -> vector<32x128xf32>
    %c7 = arith.constant 7 : index
    %c0_37 = arith.constant 0 : index
    %71 = vector.load %arg1[%c7, %c0_37] : memref<9x128xf32, #tpu.memory_space<vmem>>, vector<1x128xf32>
    %72 = vector.broadcast %71 : vector<1x128xf32> to vector<32x128xf32>
    %73 = arith.addf %70, %72 : vector<32x128xf32>
    %cst_38 = arith.constant 0.000000e+00 : f32
    %74 = vector.broadcast %cst_38 : f32 to vector<32x128xf32>
    %75 = arith.maximumf %73, %74 : vector<32x128xf32>
    %76 = arith.addf %75, %65 : vector<32x128xf32>
    %77 = arith.truncf %76 : vector<32x128xf32> to vector<32x128xbf16>
    %c960 = arith.constant 960 : index
    %c0_39 = arith.constant 0 : index
    %78 = vector.load %arg0[%c960, %c0_39] : memref<1088x128xbf16, #tpu.memory_space<vmem>>, vector<128x128xbf16>
    %cst_40 = arith.constant dense<0.000000e+00> : vector<32x128xf32>
    %79 = tpu.matmul %77, %78, %cst_40 {dimension_numbers = #tpu.dot_dimension_numbers<[1], [0], [0], [1], [0, 0, 1, 1], [], []>} : vector<32x128xbf16>, vector<128x128xbf16>, vector<32x128xf32> -> vector<32x128xf32>
    %80 = arith.truncf %79 : vector<32x128xf32> to vector<32x128xbf16>
    %cst_41 = arith.constant dense<0.000000e+00> : vector<32x128xf32>
    %81 = tpu.matmul %0, %80, %cst_41 {dimension_numbers = #tpu.dot_dimension_numbers<[1], [0], [0], [1], [0, 0, 1, 1], [], []>} : vector<32x32xbf16>, vector<32x128xbf16>, vector<32x128xf32> -> vector<32x128xf32>
    %c8 = arith.constant 8 : index
    %c0_42 = arith.constant 0 : index
    %82 = vector.load %arg1[%c8, %c0_42] : memref<9x128xf32, #tpu.memory_space<vmem>>, vector<1x128xf32>
    %83 = vector.broadcast %82 : vector<1x128xf32> to vector<32x128xf32>
    %84 = arith.addf %81, %83 : vector<32x128xf32>
    %c0_43 = arith.constant 0 : index
    %c0_44 = arith.constant 0 : index
    %85 = vector.load %arg2[%c0_43, %c0_44] : memref<32x128xf32, #tpu.memory_space<vmem>>, vector<32x128xf32>
    tpu.vector_store %arg2[%c0_43, %c0_44], %84 {strides = array<i32>} : memref<32x128xf32, #tpu.memory_space<vmem>>, vector<32x128xf32>,
    return
  }
}

</mosaic_0001>

<llo_original>
// kernel: forward.1
$region0: #{forward.1}
  #allocation0 [shape = 'u32[]', space=smem, size = 0x4, offset = 0x4, fixed_abs, tag = 'smem constant byte address 0x4 - core index']
  #allocation1 [shape = 'u32[72,128]{1,0:T(1,128)}', space=vmem, size = 0x9000, scoped, tag = 'internal scratch']
  %s0 = inlined_call_operand.vmem [shape: bf16[1088,128], index: 0, kind: input, shape index: {}]
  %s1 = inlined_call_operand.vmem [shape: f32[9,128], index: 1, kind: input, shape index: {}]
  %s2 = inlined_call_operand.vmem [shape: f32[32,128], index: 2, kind: output, shape index: {0}]
  %s3 = inlined_call_operand.vmem [shape: f32[32,128], index: 3, kind: output, shape index: {1}]
  %4 = xla_tuple %s2, %s3
  %s5 = sld [smem:[#allocation0]]
  $region26: #{forward.1} parent=0
    _
  %s7 = ssub.s32 1, %s5
  %s8 = scalar_select 0, %s7, %s5
  // Predicated region
  $region2: #{forward.1} parent=0 // pred_check
    _
  $region3: #{forward.1} parent=0 // pred_check_branch
    %10 = sbr.rel (0) target = $region5
  $region4: #{forward.1} parent=0 // pred_region
    _
  $region5: #{forward.1} parent=0 // pred_fallthru
    _
  // Predicated region
  $region6: #{forward.1} parent=0 // pred_check
    _
  $region7: #{forward.1} parent=0 // pred_check_branch
    %12 = sbr.rel (0) target = $region9
  $region8: #{forward.1} parent=0 // pred_region
    _
  $region9: #{forward.1} parent=0 // pred_fallthru
    _
  %v14 = vld [vmem:[%s0] sm:$0xf]
  %v15 = vld [vmem:[%s0 + $0x4] sm:$0xf]
  %v16 = vld [vmem:[%s0 + $0x8] sm:$0xf]
  %v17 = vld [vmem:[%s0 + $0xc] sm:$0xf]
  %v18 = vld [vmem:[%s0 + $0x10] sm:$0xf]
  %v19 = vld [vmem:[%s0 + $0x14] sm:$0xf]
  %v20 = vld [vmem:[%s0 + $0x18] sm:$0xf]
  %v21 = vld [vmem:[%s0 + $0x1c] sm:$0xf]
  %v22 = vld [vmem:[%s0 + $0x20] sm:$0xf]
  %v23 = vld [vmem:[%s0 + $0x24] sm:$0xf]
  %v24 = vld [vmem:[%s0 + $0x28] sm:$0xf]
  %v25 = vld [vmem:[%s0 + $0x2c] sm:$0xf]
  %v26 = vld [vmem:[%s0 + $0x30] sm:$0xf]
  %v27 = vld [vmem:[%s0 + $0x34] sm:$0xf]
  %v28 = vld [vmem:[%s0 + $0x38] sm:$0xf]
  %v29 = vld [vmem:[%s0 + $0x3c] sm:$0xf]
  %v30 = vld [vmem:[%s0 + $0x40] sm:$0xf]
  %v31 = vld [vmem:[%s0 + $0x44] sm:$0xf]
  %v32 = vld [vmem:[%s0 + $0x48] sm:$0xf]
  %v33 = vld [vmem:[%s0 + $0x4c] sm:$0xf]
  %v34 = vld [vmem:[%s0 + $0x50] sm:$0xf]
  %v35 = vld [vmem:[%s0 + $0x54] sm:$0xf]
  %v36 = vld [vmem:[%s0 + $0x58] sm:$0xf]
  %v37 = vld [vmem:[%s0 + $0x5c] sm:$0xf]
  %v42 = vunpack.c.l.b16 %v18
  %v43 = vunpack.c.l.b16 %v19
  %v44 = vunpack.c.l.b16 %v20
  %v45 = vunpack.c.l.b16 %v21
  %v46 = vpack.c.b16 %v43, %v42
  %v47 = vpack.c.b16 %v45, %v44
  %v66 = vunpack.c.l.b16 %v22
  %v67 = vunpack.c.l.b16 %v23
  %v68 = vunpack.c.l.b16 %v24
  %v69 = vunpack.c.l.b16 %v25
  %v70 = vunpack.c.l.b16 %v26
  %v71 = vunpack.c.l.b16 %v27
  %v72 = vunpack.c.l.b16 %v28
  %v73 = vunpack.c.l.b16 %v29
  %v74 = vunpack.c.l.b16 %v30
  %v75 = vunpack.c.l.b16 %v31
  %v76 = vunpack.c.l.b16 %v32
  %v77 = vunpack.c.l.b16 %v33
  %v78 = vunpack.c.l.b16 %v34
  %v79 = vunpack.c.l.b16 %v35
  %v80 = vunpack.c.l.b16 %v36
  %v81 = vunpack.c.l.b16 %v37
  %v82 = vpack.c.b16 %v67, %v66
  %v83 = vpack.c.b16 %v69, %v68
  %v84 = vpack.c.b16 %v71, %v70
  %v85 = vpack.c.b16 %v73, %v72
  %v86 = vpack.c.b16 %v75, %v74
  %v87 = vpack.c.b16 %v77, %v76
  %v88 = vpack.c.b16 %v79, %v78
  %v89 = vpack.c.b16 %v81, %v80
  %98 = vmatpush.bf16.msra.mxu0 %v89
  %99 = vmatpush.bf16.msra.mxu0 %v88
  %100 = vmatpush.bf16.msra.mxu0 %v87
  %101 = vmatpush.bf16.msra.mxu0 %v86
  %102 = vmatpush.bf16.msra.mxu0 %v85
  %103 = vmatpush.bf16.msra.mxu0 %v84
  %104 = vmatpush.bf16.msra.mxu0 %v83
  %105 = vmatpush.bf16.msra.mxu0 %v82
  %106 = vmatmul.bf16.gmra.mxu0 %v46
  %v107 = vpop.f32.mrf.mxu0
  %v108 = vadd.f32 0.0, %v107
  %v109 = vpop.f32.mrf.mxu0
  %v110 = vadd.f32 0.0, %v109
  %111 = vmatmul.bf16.gmra.mxu0 %v47
  %v112 = vpop.f32.mrf.mxu0
  %v113 = vadd.f32 0.0, %v112
  %v114 = vpop.f32.mrf.mxu0
  %v115 = vadd.f32 0.0, %v114
  %116 = vdwg.mxu0
  %v117 = vpack.c.bf16 %v110, %v108
  %v118 = vpack.c.bf16 %v115, %v113
  %v119 = vld [vmem:[%s1] sm:$0x1]
  %v120 = vperm.slane %v119, 0
  %v125 = vunpack.c.l.b16 %v14
  %v126 = vunpack.c.l.b16 %v15
  %v127 = vunpack.c.l.b16 %v16
  %v128 = vunpack.c.l.b16 %v17
  %v129 = vpack.c.b16 %v126, %v125
  %v130 = vpack.c.b16 %v128, %v127
  %vm131 = vcmask 261120
  %v133 = vsel %vm131, %v129, 0
  %v136 = vsel %vm131, %v130, 0
  %138 = vmatpush.bf16.msra.mxu0 0
  %139 = vmatpush.bf16.msra.mxu0 0
  %140 = vmatpush.bf16.msra.mxu0 0
  %141 = vmatpush.bf16.msra.mxu0 0
  %142 = vmatpush.bf16.msra.mxu0 0
  %143 = vmatpush.bf16.msra.mxu0 0
  %144 = vmatpush.bf16.msra.mxu0 %v118
  %145 = vmatpush.bf16.msra.mxu0 %v117
  %146 = vmatmul.bf16.gmra.mxu0 %v133
  %v147 = vpop.f32.mrf.mxu0
  %v148 = vadd.f32 %v120, %v147
  %v149 = vpop.f32.mrf.mxu0
  %v150 = vadd.f32 %v120, %v149
  %151 = vmatmul.bf16.gmra.mxu0 %v136
  %v152 = vpop.f32.mrf.mxu0
  %v153 = vadd.f32 %v120, %v152
  %v154 = vpop.f32.mrf.mxu0
  %v155 = vadd.f32 %v120, %v154
  %156 = vdwg.mxu0
  %v157 = vmax.f32 %v148, 0.0
  %v158 = vmax.f32 %v150, 0.0
  %v159 = vmax.f32 %v153, 0.0
  %v160 = vmax.f32 %v155, 0.0
  %v161 = vpack.c.bf16 %v158, %v157
  %v162 = vpack.c.bf16 %v160, %v159
  %v163 = vld [vmem:[%s0 + $0x60] sm:$0xf]
  %v164 = vld [vmem:[%s0 + $0x64] sm:$0xf]
  %v165 = vld [vmem:[%s0 + $0x68] sm:$0xf]
  %v166 = vld [vmem:[%s0 + $0x6c] sm:$0xf]
  %v167 = vld [vmem:[%s0 + $0x70] sm:$0xf]
  %v168 = vld [vmem:[%s0 + $0x74] sm:$0xf]
  %v169 = vld [vmem:[%s0 + $0x78] sm:$0xf]
  %v170 = vld [vmem:[%s0 + $0x7c] sm:$0xf]
  %v171 = vld [vmem:[%s0 + $0x80] sm:$0xf]
  %v172 = vld [vmem:[%s0 + $0x84] sm:$0xf]
  %v173 = vld [vmem:[%s0 + $0x88] sm:$0xf]
  %v174 = vld [vmem:[%s0 + $0x8c] sm:$0xf]
  %v175 = vld [vmem:[%s0 + $0x90] sm:$0xf]
  %v176 = vld [vmem:[%s0 + $0x94] sm:$0xf]
  %v177 = vld [vmem:[%s0 + $0x98] sm:$0xf]
  %v178 = vld [vmem:[%s0 + $0x9c] sm:$0xf]
  %v195 = vunpack.c.l.b16 %v163
  %v196 = vunpack.c.l.b16 %v164
  %v197 = vunpack.c.l.b16 %v165
  %v198 = vunpack.c.l.b16 %v166
  %v199 = vunpack.c.l.b16 %v167
  %v200 = vunpack.c.l.b16 %v168
  %v201 = vunpack.c.l.b16 %v169
  %v202 = vunpack.c.l.b16 %v170
  %v203 = vunpack.c.l.b16 %v171
  %v204 = vunpack.c.l.b16 %v172
  %v205 = vunpack.c.l.b16 %v173
  %v206 = vunpack.c.l.b16 %v174
  %v207 = vunpack.c.l.b16 %v175
  %v208 = vunpack.c.l.b16 %v176
  %v209 = vunpack.c.l.b16 %v177
  %v210 = vunpack.c.l.b16 %v178
  %v211 = vpack.c.b16 %v196, %v195
  %v212 = vpack.c.b16 %v198, %v197
  %v213 = vpack.c.b16 %v200, %v199
  %v214 = vpack.c.b16 %v202, %v201
  %v215 = vpack.c.b16 %v204, %v203
  %v216 = vpack.c.b16 %v206, %v205
  %v217 = vpack.c.b16 %v208, %v207
  %v218 = vpack.c.b16 %v210, %v209
  %227 = vmatpush.bf16.msra.mxu0 %v218
  %228 = vmatpush.bf16.msra.mxu0 %v217
  %229 = vmatpush.bf16.msra.mxu0 %v216
  %230 = vmatpush.bf16.msra.mxu0 %v215
  %231 = vmatpush.bf16.msra.mxu0 %v214
  %232 = vmatpush.bf16.msra.mxu0 %v213
  %233 = vmatpush.bf16.msra.mxu0 %v212
  %234 = vmatpush.bf16.msra.mxu0 %v211
  %235 = vmatmul.bf16.gmra.mxu0 %v161
  %v236 = vpop.f32.mrf.mxu0
  %v237 = vadd.f32 0.0, %v236
  %v238 = vpop.f32.mrf.mxu0
  %v239 = vadd.f32 0.0, %v238
  %240 = vmatmul.bf16.gmra.mxu0 %v162
  %v241 = vpop.f32.mrf.mxu0
  %v242 = vadd.f32 0.0, %v241
  %v243 = vpop.f32.mrf.mxu0
  %v244 = vadd.f32 0.0, %v243
  %245 = vdwg.mxu0
  %v246 = vpack.c.bf16 %v239, %v237
  %v247 = vpack.c.bf16 %v244, %v242
  %v248 = vld [vmem:[%s1 + $0x1] sm:$0x1]
  %v249 = vperm.slane %v248, 0
  %250 = vmatpush.bf16.msra.mxu0 0
  %251 = vmatpush.bf16.msra.mxu0 0
  %252 = vmatpush.bf16.msra.mxu0 0
  %253 = vmatpush.bf16.msra.mxu0 0
  %254 = vmatpush.bf16.msra.mxu0 0
  %255 = vmatpush.bf16.msra.mxu0 0
  %256 = vmatpush.bf16.msra.mxu0 %v247
  %257 = vmatpush.bf16.msra.mxu0 %v246
  %258 = vmatmul.bf16.gmra.mxu0 %v133
  %v259 = vpop.f32.mrf.mxu0
  %v260 = vadd.f32 %v249, %v259
  %v261 = vpop.f32.mrf.mxu0
  %v262 = vadd.f32 %v249, %v261
  %263 = vmatmul.bf16.gmra.mxu0 %v136
  %v264 = vpop.f32.mrf.mxu0
  %v265 = vadd.f32 %v249, %v264
  %v266 = vpop.f32.mrf.mxu0
  %v267 = vadd.f32 %v249, %v266
  %268 = vdwg.mxu0
  %v269 = vmax.f32 %v260, 0.0
  %v270 = vmax.f32 %v262, 0.0
  %v271 = vmax.f32 %v265, 0.0
  %v272 = vmax.f32 %v267, 0.0
  %v273 = vadd.f32 %v269, %v157
  %v274 = vadd.f32 %v270, %v158
  %v275 = vadd.f32 %v271, %v159
  %v276 = vadd.f32 %v272, %v160
  %v277 = vpack.c.bf16 %v274, %v273
  %v278 = vpack.c.bf16 %v276, %v275
  %v279 = vld [vmem:[%s0 + $0xa0] sm:$0xf]
  %v280 = vld [vmem:[%s0 + $0xa4] sm:$0xf]
  %v281 = vld [vmem:[%s0 + $0xa8] sm:$0xf]
  %v282 = vld [vmem:[%s0 + $0xac] sm:$0xf]
  %v283 = vld [vmem:[%s0 + $0xb0] sm:$0xf]
  %v284 = vld [vmem:[%s0 + $0xb4] sm:$0xf]
  %v285 = vld [vmem:[%s0 + $0xb8] sm:$0xf]
  %v286 = vld [vmem:[%s0 + $0xbc] sm:$0xf]
  %v287 = vld [vmem:[%s0 + $0xc0] sm:$0xf]
  %v288 = vld [vmem:[%s0 + $0xc4] sm:$0xf]
  %v289 = vld [vmem:[%s0 + $0xc8] sm:$0xf]
  %v290 = vld [vmem:[%s0 + $0xcc] sm:$0xf]
  %v291 = vld [vmem:[%s0 + $0xd0] sm:$0xf]
  %v292 = vld [vmem:[%s0 + $0xd4] sm:$0xf]
  %v293 = vld [vmem:[%s0 + $0xd8] sm:$0xf]
  %v294 = vld [vmem:[%s0 + $0xdc] sm:$0xf]
  %v311 = vunpack.c.l.b16 %v279
  %v312 = vunpack.c.l.b16 %v280
  %v313 = vunpack.c.l.b16 %v281
  %v314 = vunpack.c.l.b16 %v282
  %v315 = vunpack.c.l.b16 %v283
  %v316 = vunpack.c.l.b16 %v284
  %v317 = vunpack.c.l.b16 %v285
  %v318 = vunpack.c.l.b16 %v286
  %v319 = vunpack.c.l.b16 %v287
  %v320 = vunpack.c.l.b16 %v288
  %v321 = vunpack.c.l.b16 %v289
  %v322 = vunpack.c.l.b16 %v290
  %v323 = vunpack.c.l.b16 %v291
  %v324 = vunpack.c.l.b16 %v292
  %v325 = vunpack.c.l.b16 %v293
  %v326 = vunpack.c.l.b16 %v294
  %v327 = vpack.c.b16 %v312, %v311
  %v328 = vpack.c.b16 %v314, %v313
  %v329 = vpack.c.b16 %v316, %v315
  %v330 = vpack.c.b16 %v318, %v317
  %v331 = vpack.c.b16 %v320, %v319
  %v332 = vpack.c.b16 %v322, %v321
  %v333 = vpack.c.b16 %v324, %v323
  %v334 = vpack.c.b16 %v326, %v325
  %343 = vmatpush.bf16.msra.mxu0 %v334
  %344 = vmatpush.bf16.msra.mxu0 %v333
  %345 = vmatpush.bf16.msra.mxu0 %v332
  %346 = vmatpush.bf16.msra.mxu0 %v331
  %347 = vmatpush.bf16.msra.mxu0 %v330
  %348 = vmatpush.bf16.msra.mxu0 %v329
  %349 = vmatpush.bf16.msra.mxu0 %v328
  %350 = vmatpush.bf16.msra.mxu0 %v327
  %351 = vmatmul.bf16.gmra.mxu0 %v277
  %v352 = vpop.f32.mrf.mxu0
  %v353 = vadd.f32 0.0, %v352
  %v354 = vpop.f32.mrf.mxu0
  %v355 = vadd.f32 0.0, %v354
  %356 = vmatmul.bf16.gmra.mxu0 %v278
  %v357 = vpop.f32.mrf.mxu0
  %v358 = vadd.f32 0.0, %v357
  %v359 = vpop.f32.mrf.mxu0
  %v360 = vadd.f32 0.0, %v359
  %361 = vdwg.mxu0
  %v362 = vpack.c.bf16 %v355, %v353
  %v363 = vpack.c.bf16 %v360, %v358
  %v364 = vld [vmem:[%s1 + $0x2] sm:$0x1]
  %v365 = vperm.slane %v364, 0
  %366 = vmatpush.bf16.msra.mxu0 0
  %367 = vmatpush.bf16.msra.mxu0 0
  %368 = vmatpush.bf16.msra.mxu0 0
  %369 = vmatpush.bf16.msra.mxu0 0
  %370 = vmatpush.bf16.msra.mxu0 0
  %371 = vmatpush.bf16.msra.mxu0 0
  %372 = vmatpush.bf16.msra.mxu0 %v363
  %373 = vmatpush.bf16.msra.mxu0 %v362
  %374 = vmatmul.bf16.gmra.mxu0 %v133
  %v375 = vpop.f32.mrf.mxu0
  %v376 = vadd.f32 %v365, %v375
  %v377 = vpop.f32.mrf.mxu0
  %v378 = vadd.f32 %v365, %v377
  %379 = vmatmul.bf16.gmra.mxu0 %v136
  %v380 = vpop.f32.mrf.mxu0
  %v381 = vadd.f32 %v365, %v380
  %v382 = vpop.f32.mrf.mxu0
  %v383 = vadd.f32 %v365, %v382
  %384 = vdwg.mxu0
  %v385 = vmax.f32 %v376, 0.0
  %v386 = vmax.f32 %v378, 0.0
  %v387 = vmax.f32 %v381, 0.0
  %v388 = vmax.f32 %v383, 0.0
  %v389 = vadd.f32 %v385, %v273
  %v390 = vadd.f32 %v386, %v274
  %v391 = vadd.f32 %v387, %v275
  %v392 = vadd.f32 %v388, %v276
  %v393 = vpack.c.bf16 %v390, %v389
  %v394 = vpack.c.bf16 %v392, %v391
  %v395 = vld [vmem:[%s0 + $0xe0] sm:$0xf]
  %v396 = vld [vmem:[%s0 + $0xe4] sm:$0xf]
  %v397 = vld [vmem:[%s0 + $0xe8] sm:$0xf]
  %v398 = vld [vmem:[%s0 + $0xec] sm:$0xf]
  %v399 = vld [vmem:[%s0 + $0xf0] sm:$0xf]
  %v400 = vld [vmem:[%s0 + $0xf4] sm:$0xf]
  %v401 = vld [vmem:[%s0 + $0xf8] sm:$0xf]
  %v402 = vld [vmem:[%s0 + $0xfc] sm:$0xf]
  %v403 = vld [vmem:[%s0 + $0x100] sm:$0xf]
  %v404 = vld [vmem:[%s0 + $0x104] sm:$0xf]
  %v405 = vld [vmem:[%s0 + $0x108] sm:$0xf]
  %v406 = vld [vmem:[%s0 + $0x10c] sm:$0xf]
  %v407 = vld [vmem:[%s0 + $0x110] sm:$0xf]
  %v408 = vld [vmem:[%s0 + $0x114] sm:$0xf]
  %v409 = vld [vmem:[%s0 + $0x118] sm:$0xf]
  %v410 = vld [vmem:[%s0 + $0x11c] sm:$0xf]
  %v427 = vunpack.c.l.b16 %v395
  %v428 = vunpack.c.l.b16 %v396
  %v429 = vunpack.c.l.b16 %v397
  %v430 = vunpack.c.l.b16 %v398
  %v431 = vunpack.c.l.b16 %v399
  %v432 = vunpack.c.l.b16 %v400
  %v433 = vunpack.c.l.b16 %v401
  %v434 = vunpack.c.l.b16 %v402
  %v435 = vunpack.c.l.b16 %v403
  %v436 = vunpack.c.l.b16 %v404
  %v437 = vunpack.c.l.b16 %v405
  %v438 = vunpack.c.l.b16 %v406
  %v439 = vunpack.c.l.b16 %v407
  %v440 = vunpack.c.l.b16 %v408
  %v441 = vunpack.c.l.b16 %v409
  %v442 = vunpack.c.l.b16 %v410
  %v443 = vpack.c.b16 %v428, %v427
  %v444 = vpack.c.b16 %v430, %v429
  %v445 = vpack.c.b16 %v432, %v431
  %v446 = vpack.c.b16 %v434, %v433
  %v447 = vpack.c.b16 %v436, %v435
  %v448 = vpack.c.b16 %v438, %v437
  %v449 = vpack.c.b16 %v440, %v439
  %v450 = vpack.c.b16 %v442, %v441
  %459 = vmatpush.bf16.msra.mxu0 %v450
  %460 = vmatpush.bf16.msra.mxu0 %v449
  %461 = vmatpush.bf16.msra.mxu0 %v448
  %462 = vmatpush.bf16.msra.mxu0 %v447
  %463 = vmatpush.bf16.msra.mxu0 %v446
  %464 = vmatpush.bf16.msra.mxu0 %v445
  %465 = vmatpush.bf16.msra.mxu0 %v444
  %466 = vmatpush.bf16.msra.mxu0 %v443
  %467 = vmatmul.bf16.gmra.mxu0 %v393
  %v468 = vpop.f32.mrf.mxu0
  %v469 = vadd.f32 0.0, %v468
  %v470 = vpop.f32.mrf.mxu0
  %v471 = vadd.f32 0.0, %v470
  %472 = vmatmul.bf16.gmra.mxu0 %v394
  %v473 = vpop.f32.mrf.mxu0
  %v474 = vadd.f32 0.0, %v473
  %v475 = vpop.f32.mrf.mxu0
  %v476 = vadd.f32 0.0, %v475
  %477 = vdwg.mxu0
  %v478 = vpack.c.bf16 %v471, %v469
  %v479 = vpack.c.bf16 %v476, %v474
  %v480 = vld [vmem:[%s1 + $0x3] sm:$0x1]
  %v481 = vperm.slane %v480, 0
  %482 = vmatpush.bf16.msra.mxu0 0
  %483 = vmatpush.bf16.msra.mxu0 0
  %484 = vmatpush.bf16.msra.mxu0 0
  %485 = vmatpush.bf16.msra.mxu0 0
  %486 = vmatpush.bf16.msra.mxu0 0
  %487 = vmatpush.bf16.msra.mxu0 0
  %488 = vmatpush.bf16.msra.mxu0 %v479
  %489 = vmatpush.bf16.msra.mxu0 %v478
  %490 = vmatmul.bf16.gmra.mxu0 %v133
  %v491 = vpop.f32.mrf.mxu0
  %v492 = vadd.f32 %v481, %v491
  %v493 = vpop.f32.mrf.mxu0
  %v494 = vadd.f32 %v481, %v493
  %495 = vmatmul.bf16.gmra.mxu0 %v136
  %v496 = vpop.f32.mrf.mxu0
  %v497 = vadd.f32 %v481, %v496
  %v498 = vpop.f32.mrf.mxu0
  %v499 = vadd.f32 %v481, %v498
  %500 = vdwg.mxu0
  %501 = vst [vmem:[%s3] sm:$0xff] %v492
  %502 = vst [vmem:[%s3 + $0x8] sm:$0xff] %v494
  %503 = vst [vmem:[%s3 + $0x10] sm:$0xff] %v497
  %504 = vst [vmem:[%s3 + $0x18] sm:$0xff] %v499
  %v505 = vpack.c.bf16 %v494, %v492
  %v506 = vpack.c.bf16 %v499, %v497
  %v507 = vld [vmem:[%s0 + $0x120] sm:$0xf]
  %v508 = vld [vmem:[%s0 + $0x124] sm:$0xf]
  %v509 = vld [vmem:[%s0 + $0x128] sm:$0xf]
  %v510 = vld [vmem:[%s0 + $0x12c] sm:$0xf]
  %v511 = vld [vmem:[%s0 + $0x130] sm:$0xf]
  %v512 = vld [vmem:[%s0 + $0x134] sm:$0xf]
  %v513 = vld [vmem:[%s0 + $0x138] sm:$0xf]
  %v514 = vld [vmem:[%s0 + $0x13c] sm:$0xf]
  %v515 = vld [vmem:[%s0 + $0x140] sm:$0xf]
  %v516 = vld [vmem:[%s0 + $0x144] sm:$0xf]
  %v517 = vld [vmem:[%s0 + $0x148] sm:$0xf]
  %v518 = vld [vmem:[%s0 + $0x14c] sm:$0xf]
  %v519 = vld [vmem:[%s0 + $0x150] sm:$0xf]
  %v520 = vld [vmem:[%s0 + $0x154] sm:$0xf]
  %v521 = vld [vmem:[%s0 + $0x158] sm:$0xf]
  %v522 = vld [vmem:[%s0 + $0x15c] sm:$0xf]
  %v523 = vld [vmem:[%s1 + $0x4] sm:$0x1]
  %v524 = vperm.slane %v523, 0
  %v541 = vunpack.c.l.b16 %v507
  %v542 = vunpack.c.l.b16 %v508
  %v543 = vunpack.c.l.b16 %v509
  %v544 = vunpack.c.l.b16 %v510
  %v545 = vunpack.c.l.b16 %v511
  %v546 = vunpack.c.l.b16 %v512
  %v547 = vunpack.c.l.b16 %v513
  %v548 = vunpack.c.l.b16 %v514
  %v549 = vunpack.c.l.b16 %v515
  %v550 = vunpack.c.l.b16 %v516
  %v551 = vunpack.c.l.b16 %v517
  %v552 = vunpack.c.l.b16 %v518
  %v553 = vunpack.c.l.b16 %v519
  %v554 = vunpack.c.l.b16 %v520
  %v555 = vunpack.c.l.b16 %v521
  %v556 = vunpack.c.l.b16 %v522
  %v557 = vpack.c.b16 %v542, %v541
  %v558 = vpack.c.b16 %v544, %v543
  %v559 = vpack.c.b16 %v546, %v545
  %v560 = vpack.c.b16 %v548, %v547
  %v561 = vpack.c.b16 %v550, %v549
  %v562 = vpack.c.b16 %v552, %v551
  %v563 = vpack.c.b16 %v554, %v553
  %v564 = vpack.c.b16 %v556, %v555
  %573 = vmatpush.bf16.msra.mxu0 %v564
  %574 = vmatpush.bf16.msra.mxu0 %v563
  %575 = vmatpush.bf16.msra.mxu0 %v562
  %576 = vmatpush.bf16.msra.mxu0 %v561
  %577 = vmatpush.bf16.msra.mxu0 %v560
  %578 = vmatpush.bf16.msra.mxu0 %v559
  %579 = vmatpush.bf16.msra.mxu0 %v558
  %580 = vmatpush.bf16.msra.mxu0 %v557
  %581 = vmatmul.bf16.gmra.mxu0 %v505
  %v582 = vpop.f32.mrf.mxu0
  %v583 = vadd.f32 %v524, %v582
  %v584 = vpop.f32.mrf.mxu0
  %v585 = vadd.f32 %v524, %v584
  %586 = vmatmul.bf16.gmra.mxu0 %v506
  %v587 = vpop.f32.mrf.mxu0
  %v588 = vadd.f32 %v524, %v587
  %v589 = vpop.f32.mrf.mxu0
  %v590 = vadd.f32 %v524, %v589
  %591 = vdwg.mxu0
  %v592 = vpack.c.bf16 %v585, %v583
  %v593 = vpack.c.bf16 %v590, %v588
  %v594 = vld [vmem:[%s1 + $0x5] sm:$0x1]
  %v595 = vperm.slane %v594, 0
  %596 = vmatpush.bf16.msra.mxu0 0
  %597 = vmatpush.bf16.msra.mxu0 0
  %598 = vmatpush.bf16.msra.mxu0 0
  %599 = vmatpush.bf16.msra.mxu0 0
  %600 = vmatpush.bf16.msra.mxu0 0
  %601 = vmatpush.bf16.msra.mxu0 0
  %602 = vmatpush.bf16.msra.mxu0 %v593
  %603 = vmatpush.bf16.msra.mxu0 %v592
  %604 = vmatmul.bf16.gmra.mxu0 %v133
  %v605 = vpop.f32.mrf.mxu0
  %v606 = vadd.f32 %v595, %v605
  %v607 = vpop.f32.mrf.mxu0
  %v608 = vadd.f32 %v595, %v607
  %609 = vmatmul.bf16.gmra.mxu0 %v136
  %v610 = vpop.f32.mrf.mxu0
  %v611 = vadd.f32 %v595, %v610
  %v612 = vpop.f32.mrf.mxu0
  %v613 = vadd.f32 %v595, %v612
  %614 = vdwg.mxu0
  %v615 = vmax.f32 %v606, 0.0
  %v616 = vmax.f32 %v608, 0.0
  %v617 = vmax.f32 %v611, 0.0
  %v618 = vmax.f32 %v613, 0.0
  %v619 = vpack.c.bf16 %v616, %v615
  %v620 = vpack.c.bf16 %v618, %v617
  %v621 = vld [vmem:[%s0 + $0x160] sm:$0xf]
  %v622 = vld [vmem:[%s0 + $0x164] sm:$0xf]
  %v623 = vld [vmem:[%s0 + $0x168] sm:$0xf]
  %v624 = vld [vmem:[%s0 + $0x16c] sm:$0xf]
  %v625 = vld [vmem:[%s0 + $0x170] sm:$0xf]
  %v626 = vld [vmem:[%s0 + $0x174] sm:$0xf]
  %v627 = vld [vmem:[%s0 + $0x178] sm:$0xf]
  %v628 = vld [vmem:[%s0 + $0x17c] sm:$0xf]
  %v629 = vld [vmem:[%s0 + $0x180] sm:$0xf]
  %v630 = vld [vmem:[%s0 + $0x184] sm:$0xf]
  %v631 = vld [vmem:[%s0 + $0x188] sm:$0xf]
  %v632 = vld [vmem:[%s0 + $0x18c] sm:$0xf]
  %v633 = vld [vmem:[%s0 + $0x190] sm:$0xf]
  %v634 = vld [vmem:[%s0 + $0x194] sm:$0xf]
  %v635 = vld [vmem:[%s0 + $0x198] sm:$0xf]
  %v636 = vld [vmem:[%s0 + $0x19c] sm:$0xf]
  %v653 = vunpack.c.l.b16 %v621
  %v654 = vunpack.c.l.b16 %v622
  %v655 = vunpack.c.l.b16 %v623
  %v656 = vunpack.c.l.b16 %v624
  %v657 = vunpack.c.l.b16 %v625
  %v658 = vunpack.c.l.b16 %v626
  %v659 = vunpack.c.l.b16 %v627
  %v660 = vunpack.c.l.b16 %v628
  %v661 = vunpack.c.l.b16 %v629
  %v662 = vunpack.c.l.b16 %v630
  %v663 = vunpack.c.l.b16 %v631
  %v664 = vunpack.c.l.b16 %v632
  %v665 = vunpack.c.l.b16 %v633
  %v666 = vunpack.c.l.b16 %v634
  %v667 = vunpack.c.l.b16 %v635
  %v668 = vunpack.c.l.b16 %v636
  %v669 = vpack.c.b16 %v654, %v653
  %v670 = vpack.c.b16 %v656, %v655
  %v671 = vpack.c.b16 %v658, %v657
  %v672 = vpack.c.b16 %v660, %v659
  %v673 = vpack.c.b16 %v662, %v661
  %v674 = vpack.c.b16 %v664, %v663
  %v675 = vpack.c.b16 %v666, %v665
  %v676 = vpack.c.b16 %v668, %v667
  %685 = vmatpush.bf16.msra.mxu0 %v676
  %686 = vmatpush.bf16.msra.mxu0 %v675
  %687 = vmatpush.bf16.msra.mxu0 %v674
  %688 = vmatpush.bf16.msra.mxu0 %v673
  %689 = vmatpush.bf16.msra.mxu0 %v672
  %690 = vmatpush.bf16.msra.mxu0 %v671
  %691 = vmatpush.bf16.msra.mxu0 %v670
  %692 = vmatpush.bf16.msra.mxu0 %v669
  %693 = vmatmul.bf16.gmra.mxu0 %v619
  %v694 = vpop.f32.mrf.mxu0
  %v695 = vadd.f32 0.0, %v694
  %v696 = vpop.f32.mrf.mxu0
  %v697 = vadd.f32 0.0, %v696
  %698 = vmatmul.bf16.gmra.mxu0 %v620
  %v699 = vpop.f32.mrf.mxu0
  %v700 = vadd.f32 0.0, %v699
  %v701 = vpop.f32.mrf.mxu0
  %v702 = vadd.f32 0.0, %v701
  %703 = vdwg.mxu0
  %v704 = vpack.c.bf16 %v697, %v695
  %v705 = vpack.c.bf16 %v702, %v700
  %v706 = vld [vmem:[%s1 + $0x6] sm:$0x1]
  %v707 = vperm.slane %v706, 0
  %708 = vmatpush.bf16.msra.mxu0 0
  %709 = vmatpush.bf16.msra.mxu0 0
  %710 = vmatpush.bf16.msra.mxu0 0
  %711 = vmatpush.bf16.msra.mxu0 0
  %712 = vmatpush.bf16.msra.mxu0 0
  %713 = vmatpush.bf16.msra.mxu0 0
  %714 = vmatpush.bf16.msra.mxu0 %v705
  %715 = vmatpush.bf16.msra.mxu0 %v704
  %716 = vmatmul.bf16.gmra.mxu0 %v133
  %v717 = vpop.f32.mrf.mxu0
  %v718 = vadd.f32 %v707, %v717
  %v719 = vpop.f32.mrf.mxu0
  %v720 = vadd.f32 %v707, %v719
  %721 = vmatmul.bf16.gmra.mxu0 %v136
  %v722 = vpop.f32.mrf.mxu0
  %v723 = vadd.f32 %v707, %v722
  %v724 = vpop.f32.mrf.mxu0
  %v725 = vadd.f32 %v707, %v724
  %726 = vdwg.mxu0
  %v727 = vmax.f32 %v718, 0.0
  %v728 = vmax.f32 %v720, 0.0
  %v729 = vmax.f32 %v723, 0.0
  %v730 = vmax.f32 %v725, 0.0
  %v731 = vadd.f32 %v727, %v615
  %v732 = vadd.f32 %v728, %v616
  %v733 = vadd.f32 %v729, %v617
  %v734 = vadd.f32 %v730, %v618
  %v735 = vpack.c.bf16 %v732, %v731
  %v736 = vpack.c.bf16 %v734, %v733
  %v737 = vld [vmem:[%s0 + $0x1a0] sm:$0xf]
  %v738 = vld [vmem:[%s0 + $0x1a4] sm:$0xf]
  %v739 = vld [vmem:[%s0 + $0x1a8] sm:$0xf]
  %v740 = vld [vmem:[%s0 + $0x1ac] sm:$0xf]
  %v741 = vld [vmem:[%s0 + $0x1b0] sm:$0xf]
  %v742 = vld [vmem:[%s0 + $0x1b4] sm:$0xf]
  %v743 = vld [vmem:[%s0 + $0x1b8] sm:$0xf]
  %v744 = vld [vmem:[%s0 + $0x1bc] sm:$0xf]
  %v745 = vld [vmem:[%s0 + $0x1c0] sm:$0xf]
  %v746 = vld [vmem:[%s0 + $0x1c4] sm:$0xf]
  %v747 = vld [vmem:[%s0 + $0x1c8] sm:$0xf]
  %v748 = vld [vmem:[%s0 + $0x1cc] sm:$0xf]
  %v749 = vld [vmem:[%s0 + $0x1d0] sm:$0xf]
  %v750 = vld [vmem:[%s0 + $0x1d4] sm:$0xf]
  %v751 = vld [vmem:[%s0 + $0x1d8] sm:$0xf]
  %v752 = vld [vmem:[%s0 + $0x1dc] sm:$0xf]
  %v769 = vunpack.c.l.b16 %v737
  %v770 = vunpack.c.l.b16 %v738
  %v771 = vunpack.c.l.b16 %v739
  %v772 = vunpack.c.l.b16 %v740
  %v773 = vunpack.c.l.b16 %v741
  %v774 = vunpack.c.l.b16 %v742
  %v775 = vunpack.c.l.b16 %v743
  %v776 = vunpack.c.l.b16 %v744
  %v777 = vunpack.c.l.b16 %v745
  %v778 = vunpack.c.l.b16 %v746
  %v779 = vunpack.c.l.b16 %v747
  %v780 = vunpack.c.l.b16 %v748
  %v781 = vunpack.c.l.b16 %v749
  %v782 = vunpack.c.l.b16 %v750
  %v783 = vunpack.c.l.b16 %v751
  %v784 = vunpack.c.l.b16 %v752
  %v785 = vpack.c.b16 %v770, %v769
  %v786 = vpack.c.b16 %v772, %v771
  %v787 = vpack.c.b16 %v774, %v773
  %v788 = vpack.c.b16 %v776, %v775
  %v789 = vpack.c.b16 %v778, %v777
  %v790 = vpack.c.b16 %v780, %v779
  %v791 = vpack.c.b16 %v782, %v781
  %v792 = vpack.c.b16 %v784, %v783
  %801 = vmatpush.bf16.msra.mxu0 %v792
  %802 = vmatpush.bf16.msra.mxu0 %v791
  %803 = vmatpush.bf16.msra.mxu0 %v790
  %804 = vmatpush.bf16.msra.mxu0 %v789
  %805 = vmatpush.bf16.msra.mxu0 %v788
  %806 = vmatpush.bf16.msra.mxu0 %v787
  %807 = vmatpush.bf16.msra.mxu0 %v786
  %808 = vmatpush.bf16.msra.mxu0 %v785
  %809 = vmatmul.bf16.gmra.mxu0 %v735
  %v810 = vpop.f32.mrf.mxu0
  %v811 = vadd.f32 0.0, %v810
  %v812 = vpop.f32.mrf.mxu0
  %v813 = vadd.f32 0.0, %v812
  %814 = vmatmul.bf16.gmra.mxu0 %v736
  %v815 = vpop.f32.mrf.mxu0
  %v816 = vadd.f32 0.0, %v815
  %v817 = vpop.f32.mrf.mxu0
  %v818 = vadd.f32 0.0, %v817
  %819 = vdwg.mxu0
  %v820 = vpack.c.bf16 %v813, %v811
  %v821 = vpack.c.bf16 %v818, %v816
  %v822 = vld [vmem:[%s1 + $0x7] sm:$0x1]
  %v823 = vperm.slane %v822, 0
  %824 = vmatpush.bf16.msra.mxu0 0
  %825 = vmatpush.bf16.msra.mxu0 0
  %826 = vmatpush.bf16.msra.mxu0 0
  %827 = vmatpush.bf16.msra.mxu0 0
  %828 = vmatpush.bf16.msra.mxu0 0
  %829 = vmatpush.bf16.msra.mxu0 0
  %830 = vmatpush.bf16.msra.mxu0 %v821
  %831 = vmatpush.bf16.msra.mxu0 %v820
  %832 = vmatmul.bf16.gmra.mxu0 %v133
  %v833 = vpop.f32.mrf.mxu0
  %v834 = vadd.f32 %v823, %v833
  %v835 = vpop.f32.mrf.mxu0
  %v836 = vadd.f32 %v823, %v835
  %837 = vmatmul.bf16.gmra.mxu0 %v136
  %v838 = vpop.f32.mrf.mxu0
  %v839 = vadd.f32 %v823, %v838
  %v840 = vpop.f32.mrf.mxu0
  %v841 = vadd.f32 %v823, %v840
  %842 = vdwg.mxu0
  %v843 = vmax.f32 %v834, 0.0
  %v844 = vmax.f32 %v836, 0.0
  %v845 = vmax.f32 %v839, 0.0
  %v846 = vmax.f32 %v841, 0.0
  %v847 = vadd.f32 %v843, %v731
  %v848 = vadd.f32 %v844, %v732
  %v849 = vadd.f32 %v845, %v733
  %v850 = vadd.f32 %v846, %v734
  %v851 = vpack.c.bf16 %v848, %v847
  %v852 = vpack.c.bf16 %v850, %v849
  %v853 = vld [vmem:[%s0 + $0x1e0] sm:$0xf]
  %v854 = vld [vmem:[%s0 + $0x1e4] sm:$0xf]
  %v855 = vld [vmem:[%s0 + $0x1e8] sm:$0xf]
  %v856 = vld [vmem:[%s0 + $0x1ec] sm:$0xf]
  %v857 = vld [vmem:[%s0 + $0x1f0] sm:$0xf]
  %v858 = vld [vmem:[%s0 + $0x1f4] sm:$0xf]
  %v859 = vld [vmem:[%s0 + $0x1f8] sm:$0xf]
  %v860 = vld [vmem:[%s0 + $0x1fc] sm:$0xf]
  %v861 = vld [vmem:[%s0 + $0x200] sm:$0xf]
  %v862 = vld [vmem:[%s0 + $0x204] sm:$0xf]
  %v863 = vld [vmem:[%s0 + $0x208] sm:$0xf]
  %v864 = vld [vmem:[%s0 + $0x20c] sm:$0xf]
  %v865 = vld [vmem:[%s0 + $0x210] sm:$0xf]
  %v866 = vld [vmem:[%s0 + $0x214] sm:$0xf]
  %v867 = vld [vmem:[%s0 + $0x218] sm:$0xf]
  %v868 = vld [vmem:[%s0 + $0x21c] sm:$0xf]
  %v885 = vunpack.c.l.b16 %v853
  %v886 = vunpack.c.l.b16 %v854
  %v887 = vunpack.c.l.b16 %v855
  %v888 = vunpack.c.l.b16 %v856
  %v889 = vunpack.c.l.b16 %v857
  %v890 = vunpack.c.l.b16 %v858
  %v891 = vunpack.c.l.b16 %v859
  %v892 = vunpack.c.l.b16 %v860
  %v893 = vunpack.c.l.b16 %v861
  %v894 = vunpack.c.l.b16 %v862
  %v895 = vunpack.c.l.b16 %v863
  %v896 = vunpack.c.l.b16 %v864
  %v897 = vunpack.c.l.b16 %v865
  %v898 = vunpack.c.l.b16 %v866
  %v899 = vunpack.c.l.b16 %v867
  %v900 = vunpack.c.l.b16 %v868
  %v901 = vpack.c.b16 %v886, %v885
  %v902 = vpack.c.b16 %v888, %v887
  %v903 = vpack.c.b16 %v890, %v889
  %v904 = vpack.c.b16 %v892, %v891
  %v905 = vpack.c.b16 %v894, %v893
  %v906 = vpack.c.b16 %v896, %v895
  %v907 = vpack.c.b16 %v898, %v897
  %v908 = vpack.c.b16 %v900, %v899
  %917 = vmatpush.bf16.msra.mxu0 %v908
  %918 = vmatpush.bf16.msra.mxu0 %v907
  %919 = vmatpush.bf16.msra.mxu0 %v906
  %920 = vmatpush.bf16.msra.mxu0 %v905
  %921 = vmatpush.bf16.msra.mxu0 %v904
  %922 = vmatpush.bf16.msra.mxu0 %v903
  %923 = vmatpush.bf16.msra.mxu0 %v902
  %924 = vmatpush.bf16.msra.mxu0 %v901
  %925 = vmatmul.bf16.gmra.mxu0 %v851
  %v926 = vpop.f32.mrf.mxu0
  %v927 = vadd.f32 0.0, %v926
  %v928 = vpop.f32.mrf.mxu0
  %v929 = vadd.f32 0.0, %v928
  %930 = vmatmul.bf16.gmra.mxu0 %v852
  %v931 = vpop.f32.mrf.mxu0
  %v932 = vadd.f32 0.0, %v931
  %v933 = vpop.f32.mrf.mxu0
  %v934 = vadd.f32 0.0, %v933
  %935 = vdwg.mxu0
  %v936 = vpack.c.bf16 %v929, %v927
  %v937 = vpack.c.bf16 %v934, %v932
  %v938 = vld [vmem:[%s1 + $0x8] sm:$0x1]
  %v939 = vperm.slane %v938, 0
  %940 = vmatpush.bf16.msra.mxu0 0
  %941 = vmatpush.bf16.msra.mxu0 0
  %942 = vmatpush.bf16.msra.mxu0 0
  %943 = vmatpush.bf16.msra.mxu0 0
  %944 = vmatpush.bf16.msra.mxu0 0
  %945 = vmatpush.bf16.msra.mxu0 0
  %946 = vmatpush.bf16.msra.mxu0 %v937
  %947 = vmatpush.bf16.msra.mxu0 %v936
  %948 = vmatmul.bf16.gmra.mxu0 %v133
  %v949 = vpop.f32.mrf.mxu0
  %v950 = vadd.f32 %v939, %v949
  %v951 = vpop.f32.mrf.mxu0
  %v952 = vadd.f32 %v939, %v951
  %953 = vmatmul.bf16.gmra.mxu0 %v136
  %v954 = vpop.f32.mrf.mxu0
  %v955 = vadd.f32 %v939, %v954
  %v956 = vpop.f32.mrf.mxu0
  %v957 = vadd.f32 %v939, %v956
  %958 = vdwg.mxu0
  %959 = vst [vmem:[%s2] sm:$0xff] %v950
  %960 = vst [vmem:[%s2 + $0x8] sm:$0xff] %v952
  %961 = vst [vmem:[%s2 + $0x10] sm:$0xff] %v955
  %962 = vst [vmem:[%s2 + $0x18] sm:$0xff] %v957
  // Predicated region
  $region10: #{forward.1} parent=0 // pred_check
    _
  $region11: #{forward.1} parent=0 // pred_check_branch
    %964 = sbr.rel (0) target = $region13
  $region12: #{forward.1} parent=0 // pred_region
    _
  $region13: #{forward.1} parent=0 // pred_fallthru
    _
  // Predicated region
  $region14: #{forward.1} parent=0 // pred_check
    _
  $region15: #{forward.1} parent=0 // pred_check_branch
    %966 = sbr.rel (0) target = $region17
  $region16: #{forward.1} parent=0 // pred_region
    _
  $region17: #{forward.1} parent=0 // pred_fallthru
    _
  // Predicated region
  $region18: #{forward.1} parent=0 // pred_check
    _
  $region19: #{forward.1} parent=0 // pred_check_branch
    %968 = sbr.rel (0) target = $region21
  $region20: #{forward.1} parent=0 // pred_region
    _
  $region21: #{forward.1} parent=0 // pred_fallthru
    _
  // Predicated region
  $region22: #{forward.1} parent=0 // pred_check
    _
  $region23: #{forward.1} parent=0 // pred_check_branch
    %970 = sbr.rel (0) target = $region25
  $region24: #{forward.1} parent=0 // pred_region
    _
  $region25: #{forward.1} parent=0 // pred_fallthru
    _

</llo_original>
